<compile_context>
chip_gen: v6e
topology: v6e:2x2x1
jax: 0.10.0
libtpu: 0.0.40
codegen_flags: <defaults>
</compile_context>

<pallas_src>
import functools

import numpy as np
import jax
import jax.numpy as jnp
from jax import lax
from jax.experimental import pallas as pl
from jax.experimental.pallas import tpu as pltpu

FILT_SIZE = 4   # module defaults: filt_size=4, stride=2, padding=1
STRIDE = 2
PADDING = 1


def create_binomial_filter(filt_size: int) -> np.ndarray:
    if filt_size == 1:
        return np.array([1.0])
    a = np.array([1.0])
    for _ in range(1, filt_size):
        a = np.convolve(a, np.array([1.0, 1.0]))
    return a / a.sum()


def _cdiv(a, b):
    return -(-a // b)


def _extract_1d_taps(filt):
    """Recover the separable 1-D row/col taps from the (C,1,K,K) filter buffer."""
    try:
        f = np.asarray(filt).astype(np.float64)
    except Exception:
        f = None
    if f is None:
        # TODO(synk): filt is traced here; fall back to the module's canonical binomial
        # taps (a genuinely per-channel / non-separable filter would need a VMEM operand).
        a = create_binomial_filter(FILT_SIZE)
        return a, a
    assert np.allclose(f, f[:1]), (
        "Pallas BlurTranspose assumes a channel-identical filter (as built by the module)")
    f2d = f[0, 0]
    a_row = f2d.sum(axis=1)
    a_col = f2d.sum(axis=0) / f2d.sum()
    assert np.allclose(np.outer(a_row, a_col), f2d, atol=1e-6), (
        "Pallas BlurTranspose assumes a separable (binomial) filter")
    return a_row, a_col


def _build_col_matrix(a_col, W):
    """Banded (W, 2W) matrix of the 1-D stride-2 / pad-1 transposed conv along width.

    wcol[v, 2w]   = a_col[1]*(v==w) + a_col[3]*(v==w-1)
    wcol[v, 2w+1] = a_col[2]*(v==w) + a_col[0]*(v==w+1)
    A single x @ wcol matmul performs the column mixing *and* the even/odd output-column
    interleave (no dilated zero lanes, no lane shuffles) on the otherwise-idle MXU.
    """
    wcol = np.zeros((W, 2 * W), np.float32)
    for w in range(W):
        wcol[w, 2 * w] = a_col[1]
        wcol[w, 2 * w + 1] = a_col[2]
        if w >= 1:
            wcol[w - 1, 2 * w] = a_col[3]
        if w + 1 < W:
            wcol[w + 1, 2 * w + 1] = a_col[0]
    return jnp.asarray(wcol)


def _blur_transpose_kernel(wcol_ref, x_ref, o_ref, *, rows_per_img, row_taps):
    # wcol_ref : (W, 2W) f32 VMEM  -- banded column-mix + interleave matrix (MXU operand)
    # x_ref    : (R, W)  VMEM      -- R = images_per_block * H rows of raw (un-dilated) input
    # o_ref    : (R, 4W) VMEM      -- o[r, rh*2W + ow] == y[img(r), 2*h(r) + rh, ow]
    a0, a1, a2, a3 = row_taps                     # baked compile-time constants
    H = rows_per_img

    x = x_ref[...].astype(jnp.float32)            # (R, W)

    # Column stage on the MXU: cm[r, 2w+rw] = sum_v wcol[v, 2w+rw] * x[r, v]
    cm = jnp.dot(x, wcol_ref[...],
                 preferred_element_type=jnp.float32,
                 precision=lax.Precision.HIGHEST)  # (R, 2W)
    R, W2 = cm.shape

    # Row stage: 2 taps per output-row parity.  Shifts via XLU rolls; rows that would
    # cross an image boundary inside the block are zeroed with a cheap per-row mask.
    cm_up = pltpu.roll(cm, 1, axis=0)              # cm_up[r] = cm[r-1]
    cm_dn = pltpu.roll(cm, R - 1, axis=0)          # cm_dn[r] = cm[r+1]
    r_in_img = lax.broadcasted_iota(jnp.int32, (R, 1), 0) % H
    cm_up = jnp.where(r_in_img == 0, 0.0, cm_up)
    cm_dn = jnp.where(r_in_img == H - 1, 0.0, cm_dn)

    q0 = a1 * cm + a3 * cm_up                      # output rows 2h
    q1 = a2 * cm + a0 * cm_dn                      # output rows 2h + 1

    # Two lane-dense half stores (lane-aligned for W >= 64); no (R, 4W) concat temp.
    o_ref[:, 0:W2] = q0.astype(o_ref.dtype)
    o_ref[:, W2:2 * W2] = q1.astype(o_ref.dtype)


def _pick_images_per_block(num_images, H, W, budget_bytes):
    """Largest whole-image count per block fitting the VMEM budget (padded-layout aware),
    while keeping >=2 (preferably >=4) grid steps for pipelining / v7x megacore."""
    wp = _cdiv(W, 128) * 128
    w2p = _cdiv(2 * W, 128) * 128
    w4p = _cdiv(4 * W, 128) * 128

    def est(ct):
        rp = _cdiv(ct * H, 8) * 8
        # double-buffered in/out blocks + ~7 (R, 2W)-sized f32 temporaries in the body.
        return 4 * rp * (2 * wp + 2 * w4p + 7 * w2p)

    cands = [ct for ct in range(1, num_images + 1)
             if num_images % ct == 0 and ((ct * H) % 8 == 0 or ct == num_images)]
    fitting = [ct for ct in cands if est(ct) <= budget_bytes]
    if not fitting:
        # TODO(synk): add H/W tiling (1-row halo) for feature maps too large for one block.
        return min(cands)
    for min_steps in (4, 2, 1):
        ok = [ct for ct in fitting if num_images // ct >= min_steps]
        if ok:
            return max(ok)
    return max(fitting)


def blur_transpose(x, filt):
    """Pallas TPU implementation of BlurTranspose.forward (filt_size=4, stride=2, pad=1)."""
    N, C, H, W = x.shape
    K = filt.shape[-1]
    assert filt.shape == (C, 1, K, K)
    assert K == FILT_SIZE and STRIDE == 2 and PADDING == 1   # tap algebra below is specific

    a_row, a_col = _extract_1d_taps(filt)
    wcol = _build_col_matrix(a_col, W)

    # Generation-aware VMEM budget (v7x has 64 MiB / TC vs 128 MiB on v5e / v6e).
    try:
        vmem_cap = int(pltpu.get_tpu_info().vmem_capacity_bytes)
    except Exception:
        vmem_cap = 64 * 1024 * 1024
    vmem_limit = max(min(int(vmem_cap * 0.45), 96 * 1024 * 1024), 16 * 1024 * 1024)
    wcol_bytes = 2 * 4 * (_cdiv(W, 8) * 8) * (_cdiv(2 * W, 128) * 128)
    tile_budget = max(int(vmem_limit * 0.6) - wcol_bytes, 1 * 1024 * 1024)

    num_images = N * C                       # tile over N*C jointly (helps awkward C)
    ipb = _pick_images_per_block(num_images, H, W, tile_budget)
    grid = (num_images // ipb,)
    rows_per_block = ipb * H

    # Free row-major view; no padding / dilation / interleave passes outside the kernel.
    x2d = x.reshape(num_images * H, W)

    kernel = functools.partial(
        _blur_transpose_kernel,
        rows_per_img=H,
        row_taps=tuple(float(v) for v in a_row),
    )

    out2d = pl.pallas_call(
        kernel,
        out_shape=jax.ShapeDtypeStruct((num_images * H, 4 * W), x.dtype),
        grid_spec=pltpu.PrefetchScalarGridSpec(
            num_scalar_prefetch=0,
            grid=grid,
            in_specs=[
                pl.BlockSpec((W, 2 * W), lambda i: (0, 0)),            # wcol (resident)
                pl.BlockSpec((rows_per_block, W), lambda i: (i, 0)),
            ],
            out_specs=pl.BlockSpec((rows_per_block, 4 * W), lambda i: (i, 0)),
        ),
        compiler_params=pltpu.CompilerParams(
            dimension_semantics=("parallel",),
            vmem_limit_bytes=vmem_limit,
        ),
    )(wcol, x2d)

    # out2d[(n*C+c)*H + h, rh*2W + ow] == y[n, c, 2h+rh, ow]  ->  pure row-major reshape.
    return out2d.reshape(N, C, 2 * H, 2 * W)


def conv_transpose_ref(x, filt):
    """Pure-JAX reference for F.conv_transpose2d(x, filt, stride=2, groups=C, padding=1)."""
    C = x.shape[1]
    K = filt.shape[-1]
    rhs = jnp.flip(filt, axis=(2, 3))      # (C, 1, K, K), depthwise OIHW
    pad = K - 1 - PADDING
    return lax.conv_general_dilated(
        x, rhs,
        window_strides=(1, 1),
        padding=[(pad, pad), (pad, pad)],
        lhs_dilation=(STRIDE, STRIDE),
        dimension_numbers=("NCHW", "OIHW", "NCHW"),
        feature_group_count=C,
    )


def _make_module_filter(channels):
    a = create_binomial_filter(FILT_SIZE)
    f2d = a[:, None] * a[None, :]
    f2d = f2d / f2d.sum()
    return jnp.broadcast_to(
        jnp.asarray(f2d, dtype=jnp.float32)[None, None, :, :],
        (channels, 1, FILT_SIZE, FILT_SIZE))


if __name__ == "__main__":
    def check(shape, key):
        n, c, h, w = shape
        x = jax.random.normal(key, shape, dtype=jnp.float32)
        # Snap test inputs to the bf16 grid so MXU-pass rounding differences between the
        # Pallas matmul and the XLA reference cannot affect the tight tolerance check.
        x = x.astype(jnp.bfloat16).astype(jnp.float32)
        filt = _make_module_filter(c)
        y = jax.block_until_ready(blur_transpose(x, filt))
        ref = conv_transpose_ref(x, filt)
        assert y.shape == (n, c, 2 * h, 2 * w), y.shape
        err = float(jnp.max(jnp.abs(y - ref)))
        assert jnp.allclose(y, ref, atol=1e-5, rtol=1e-5), err

    # Module-default-sized small case.
    check((2, 4, 16, 16), jax.random.PRNGKey(0))
    # Lane-dense width (2W / 4W multiples of 128) + non-power-of-two channel count.
    check((1, 3, 24, 128), jax.random.PRNGKey(1))
    # H not a multiple of 8 -> single full-block (images_per_block == N*C) path.
    check((1, 2, 12, 32), jax.random.PRNGKey(2))

    print("KERNEL_OK")
</pallas_src>

<mosaic_0001>
module attributes {stable_mosaic.version = 11 : i64} {
  func.func @_blur_transpose_kernel(%arg0: i32, %arg1: memref<16x32xf32, #tpu.memory_space<vmem>>, %arg2: memref<32x16xf32, #tpu.memory_space<vmem>>, %arg3: memref<32x64xf32, #tpu.memory_space<vmem>>) attributes {dimension_semantics = [#tpu.dimension_semantics<parallel>], iteration_bounds = array<i64: 4>, scalar_prefetch = 0 : i64, scratch_operands = 0 : i64, tpu.core_type = #tpu.core_type<tc>, window_params = [{pipeline_mode = #tpu.pipeline_mode<synchronous>, transform_indices = @transform_0, window_bounds = array<i64: 16, 32>}, {transform_indices = @transform_1, window_bounds = array<i64: 32, 16>}, {transform_indices = @transform_2, window_bounds = array<i64: 32, 64>}]} {
    %c0 = arith.constant 0 : index
    %c0_0 = arith.constant 0 : index
    %0 = vector.load %arg2[%c0, %c0_0] : memref<32x16xf32, #tpu.memory_space<vmem>>, vector<32x16xf32>
    %c0_1 = arith.constant 0 : index
    %c0_2 = arith.constant 0 : index
    %1 = vector.load %arg1[%c0_1, %c0_2] : memref<16x32xf32, #tpu.memory_space<vmem>>, vector<16x32xf32>
    %cst = arith.constant dense<0.000000e+00> : vector<32x32xf32>
    %2 = tpu.matmul %0, %1, %cst {dimension_numbers = #tpu.dot_dimension_numbers<[1], [0], [0], [1], [0, 0, 1, 1], [], []>, precision = #tpu.contract_precision<fp32>} : vector<32x16xf32>, vector<16x32xf32>, vector<32x32xf32> -> vector<32x32xf32>
    %c1_i32 = arith.constant 1 : i32
    %3 = tpu.dynamic_rotate %2 by %c1_i32 dim 0 : vector<32x32xf32>, i32 -> vector<32x32xf32>
    %c31_i32 = arith.constant 31 : i32
    %4 = tpu.dynamic_rotate %2 by %c31_i32 dim 0 : vector<32x32xf32>, i32 -> vector<32x32xf32>
    %5 = tpu.iota {dimensions = array<i32: 0>} : vector<32x1xi32>
    %c16_i32 = arith.constant 16 : i32
    %c0_i32 = arith.constant 0 : i32
    %6 = arith.cmpi eq, %c16_i32, %c0_i32 : i32
    %c1_i32_3 = arith.constant 1 : i32
    %7 = arith.select %6, %c1_i32_3, %c16_i32 : i32
    %8 = vector.broadcast %7 : i32 to vector<32x1xi32>
    %9 = arith.remsi %5, %8 : vector<32x1xi32>
    %c0_i32_4 = arith.constant 0 : i32
    %10 = vector.broadcast %c0_i32_4 : i32 to vector<32x1xi32>
    %11 = arith.cmpi ne, %9, %10 : vector<32x1xi32>
    %c0_i32_5 = arith.constant 0 : i32
    %12 = vector.broadcast %c0_i32_5 : i32 to vector<32x1xi32>
    %13 = arith.cmpi slt, %9, %12 : vector<32x1xi32>
    %c0_i32_6 = arith.constant 0 : i32
    %14 = arith.cmpi slt, %7, %c0_i32_6 : i32
    %15 = vector.broadcast %14 : i1 to vector<32x1xi1>
    %16 = vector.broadcast %15 : vector<32x1xi1> to vector<32x1xi1>
    %17 = arith.xori %13, %16 : vector<32x1xi1>
    %18 = arith.andi %17, %11 : vector<32x1xi1>
    %19 = vector.broadcast %7 : i32 to vector<32x1xi32>
    %20 = arith.addi %9, %19 : vector<32x1xi32>
    %21 = arith.select %18, %20, %9 : vector<32x1xi1>, vector<32x1xi32>
    %c0_i32_7 = arith.constant 0 : i32
    %22 = vector.broadcast %c0_i32_7 : i32 to vector<32x1xi32>
    %23 = arith.cmpi eq, %21, %22 : vector<32x1xi32>
    %cst_8 = arith.constant 0.000000e+00 : f32
    %24 = vector.shape_cast %23 : vector<32x1xi1> to vector<32x1xi1>
    %25 = vector.broadcast %24 : vector<32x1xi1> to vector<32x32xi1>
    %26 = vector.broadcast %cst_8 : f32 to vector<32x32xf32>
    %27 = arith.select %25, %26, %3 : vector<32x32xi1>, vector<32x32xf32>
    %c15_i32 = arith.constant 15 : i32
    %28 = vector.broadcast %c15_i32 : i32 to vector<32x1xi32>
    %29 = arith.cmpi eq, %21, %28 : vector<32x1xi32>
    %cst_9 = arith.constant 0.000000e+00 : f32
    %30 = vector.shape_cast %29 : vector<32x1xi1> to vector<32x1xi1>
    %31 = vector.broadcast %30 : vector<32x1xi1> to vector<32x32xi1>
    %32 = vector.broadcast %cst_9 : f32 to vector<32x32xf32>
    %33 = arith.select %31, %32, %4 : vector<32x32xi1>, vector<32x32xf32>
    %cst_10 = arith.constant 3.750000e-01 : f32
    %34 = vector.broadcast %cst_10 : f32 to vector<32x32xf32>
    %35 = arith.mulf %34, %2 : vector<32x32xf32>
    %cst_11 = arith.constant 1.250000e-01 : f32
    %36 = vector.broadcast %cst_11 : f32 to vector<32x32xf32>
    %37 = arith.mulf %36, %27 : vector<32x32xf32>
    %38 = arith.addf %35, %37 : vector<32x32xf32>
    %cst_12 = arith.constant 3.750000e-01 : f32
    %39 = vector.broadcast %cst_12 : f32 to vector<32x32xf32>
    %40 = arith.mulf %39, %2 : vector<32x32xf32>
    %cst_13 = arith.constant 1.250000e-01 : f32
    %41 = vector.broadcast %cst_13 : f32 to vector<32x32xf32>
    %42 = arith.mulf %41, %33 : vector<32x32xf32>
    %43 = arith.addf %40, %42 : vector<32x32xf32>
    %c0_14 = arith.constant 0 : index
    %c0_15 = arith.constant 0 : index
    %44 = vector.load %arg3[%c0_14, %c0_15] : memref<32x64xf32, #tpu.memory_space<vmem>>, vector<32x32xf32>
    tpu.vector_store %arg3[%c0_14, %c0_15], %38 {strides = array<i32>} : memref<32x64xf32, #tpu.memory_space<vmem>>, vector<32x32xf32>,
    %c0_16 = arith.constant 0 : index
    %c32 = arith.constant 32 : index
    %45 = vector.load %arg3[%c0_16, %c32] : memref<32x64xf32, #tpu.memory_space<vmem>>, vector<32x32xf32>
    tpu.vector_store %arg3[%c0_16, %c32], %43 {strides = array<i32>} : memref<32x64xf32, #tpu.memory_space<vmem>>, vector<32x32xf32>,
    return
  }
  func.func @transform_0(%arg0: i32) -> (i32, i32) {
    %c0_i32 = arith.constant 0 : i32
    %c0_i32_0 = arith.constant 0 : i32
    %c0_i32_1 = arith.constant 0 : i32
    return %c0_i32, %c0_i32_0 : i32, i32
  }
  func.func @transform_1(%arg0: i32) -> (i32, i32) {
    %c0_i32 = arith.constant 0 : i32
    %c0_i32_0 = arith.constant 0 : i32
    return %arg0, %c0_i32 : i32, i32
  }
  func.func @transform_2(%arg0: i32) -> (i32, i32) {
    %c0_i32 = arith.constant 0 : i32
    %c0_i32_0 = arith.constant 0 : i32
    return %arg0, %c0_i32 : i32, i32
  }
}

</mosaic_0001>

<llo_original>
// kernel: tpu_custom_call.1
$region0: #{tpu_custom_call.1}
  #allocation0 [shape = 'u32[]', space=smem, size = 0x4, offset = 0x4, fixed_abs, tag = 'smem constant byte address 0x4 - core index']
  #allocation1 [shape = 'u32[144,128]{1,0:T(1,128)}', space=vmem, size = 0x12000, scoped, tag = 'internal scratch']
  %s0 = inlined_call_operand.vmem [shape: f32[16,32], index: 0, kind: input, shape index: {}]
  %s1 = inlined_call_operand.vmem [shape: f32[128,16], index: 1, kind: input, shape index: {}]
  %s2 = inlined_call_operand.vmem [shape: f32[128,64], index: 2, kind: output, shape index: {}]
  %s3 = sld [smem:[#allocation0]]
  $region41: #{tpu_custom_call.1} parent=0
    _
  %s5 = ssub.s32 1, %s3
  %s6 = scalar_select 0, %s5, %s3
  loop: start=0, step=1, limit=6
  $region2: #{tpu_custom_call.1} parent=0 // loop_pre_header
    _
  $region3: #{tpu_custom_call.1} parent=0 // loop_header
    %s8 = sphi 0, %s12
    %p9 = scmp.ge.s32.totalorder %s8, 6
    %s16 = sphi 0, %s16
    %s18 = sphi 0, %s16
    %s19 = sphi 0, %s18
    %s33 = sphi 0, %s19
    %s39 = sphi 0, %s41
    %s42 = sphi 0, %s39
    %s43 = sphi 0, %s42
    %s59 = sphi 0, %s43
    %s65 = sphi 0, %s67
    %s68 = sphi 0, %s65
    %s69 = sphi 0, %s68
    %s85 = sphi 0, %s69
  $region4: #{tpu_custom_call.1} parent=0 // loop_header_branch
    %11 = sbr.rel (%p9) target = $region8
  $region5: #{tpu_custom_call.1} parent=0 // loop_body
    %s13 = ssub.s32 %s8, 1
    %s14 = ssub.s32 %s8, 2
    %s15 = sadd.s32 %s8, 1
    %s17 = sadd.s32 %s16, 1
    %p20 = scmp.eq.s32.totalorder %s8, 3
    %p21 = scmp.ne.s32.totalorder %s16, %s18
    %p22 = scmp.eq.s32.totalorder %s8, 0
    %p23 = por %p21, %p22
    %p24 = scmp.ne.s32.totalorder %s16, %s18
    %p25 = scmp.eq.s32.totalorder %s13, 3
    %p26 = por %p24, %p25
    %p27 = scmp.ne.s32.totalorder %s18, %s19
    %p28 = scmp.eq.s32.totalorder %s13, 0
    %p29 = por %p27, %p28
    %p30 = scmp.ne.s32.totalorder %s18, %s19
    %p31 = scmp.eq.s32.totalorder %s14, 3
    %p32 = por %p30, %p31
    %p34 = scmp.ne.s32.totalorder %s19, %s33
    %p35 = scmp.eq.s32.totalorder %s14, 0
    %p36 = por %p34, %p35
    %s37 = ssub.s32 %s8, %s15
    %p38 = scmp.eq.s32.totalorder %s37, 0
    %s40 = sadd.s32 %s39, 1
    %s41 = scalar_select %p38, %s39, %s40
    %p44 = pneg %p38
    %p45 = scmp.eq.s32.totalorder %s8, 3
    %p46 = por %p44, %p45
    %p47 = scmp.ne.s32.totalorder %s39, %s42
    %p48 = scmp.eq.s32.totalorder %s8, 0
    %p49 = por %p47, %p48
    %p50 = scmp.ne.s32.totalorder %s39, %s42
    %p51 = scmp.eq.s32.totalorder %s13, 3
    %p52 = por %p50, %p51
    %p53 = scmp.ne.s32.totalorder %s42, %s43
    %p54 = scmp.eq.s32.totalorder %s13, 0
    %p55 = por %p53, %p54
    %p56 = scmp.ne.s32.totalorder %s42, %s43
    %p57 = scmp.eq.s32.totalorder %s14, 3
    %p58 = por %p56, %p57
    %p60 = scmp.ne.s32.totalorder %s43, %s59
    %p61 = scmp.eq.s32.totalorder %s14, 0
    %p62 = por %p60, %p61
    %s63 = ssub.s32 %s8, %s15
    %p64 = scmp.eq.s32.totalorder %s63, 0
    %s66 = sadd.s32 %s65, 1
    %s67 = scalar_select %p64, %s65, %s66
    %p70 = pneg %p64
    %p71 = scmp.eq.s32.totalorder %s8, 3
    %p72 = por %p70, %p71
    %p73 = scmp.ne.s32.totalorder %s65, %s68
    %p74 = scmp.eq.s32.totalorder %s8, 0
    %p75 = por %p73, %p74
    %p76 = scmp.ne.s32.totalorder %s65, %s68
    %p77 = scmp.eq.s32.totalorder %s13, 3
    %p78 = por %p76, %p77
    %p79 = scmp.ne.s32.totalorder %s68, %s69
    %p80 = scmp.eq.s32.totalorder %s13, 0
    %p81 = por %p79, %p80
    %p82 = scmp.ne.s32.totalorder %s68, %s69
    %p83 = scmp.eq.s32.totalorder %s14, 3
    %p84 = por %p82, %p83
    %p86 = scmp.ne.s32.totalorder %s69, %s85
    %p87 = scmp.eq.s32.totalorder %s14, 0
    %p88 = por %p86, %p87
    %p89 = scmp.le.s32.totalorder 1, %s8
    %p90 = scmp.lt.s32.totalorder %s8, 5
    %p91 = pnand %p89, %p90
    %p92 = pneg %p91
    // Predicated region
    $region9: #{tpu_custom_call.1} parent=5 // pred_check
      _
    $region10: #{tpu_custom_call.1} parent=5 // pred_check_branch
      %94 = sbr.rel (%p91) target = $region12
    $region11: #{tpu_custom_call.1} parent=5 // pred_region
      %s95 = ssub.s32 %s8, 1
      // Predicated region
      $region13: #{tpu_custom_call.1} parent=11 // pred_check
        %p96 = pneg %p29
      $region14: #{tpu_custom_call.1} parent=11 // pred_check_branch
        %98 = sbr.rel (%p96) target = $region16
      $region15: #{tpu_custom_call.1} parent=11 // pred_region
        _
      $region16: #{tpu_custom_call.1} parent=11 // pred_fallthru
        _
    $region12: #{tpu_custom_call.1} parent=5 // pred_fallthru
      _
    %p99 = scmp.lt.s32.totalorder %s8, 4
    // Predicated region
    $region17: #{tpu_custom_call.1} parent=5 // pred_check
      %p100 = pneg %p99
    $region18: #{tpu_custom_call.1} parent=5 // pred_check_branch
      %102 = sbr.rel (%p100) target = $region20
    $region19: #{tpu_custom_call.1} parent=5 // pred_region
      // Predicated region
      $region21: #{tpu_custom_call.1} parent=19 // pred_check
        %p103 = pneg %p49
      $region22: #{tpu_custom_call.1} parent=19 // pred_check_branch
        %105 = sbr.rel (%p103) target = $region24
      $region23: #{tpu_custom_call.1} parent=19 // pred_region
        %s106 = smul.u32 4, %s8
        %p107 = scmp.lt.s32.totalorder %s106, 15
        %s108 = scalar_select %p107, %s106, 15
        %s109 = smul.addr %s108, 8
        %s110 = scalar_lea.vmem %s1, %s109
        %s111 = smul.u32 4, %s8
      $region24: #{tpu_custom_call.1} parent=19 // pred_fallthru
        _
    $region20: #{tpu_custom_call.1} parent=5 // pred_fallthru
      _
    %p112 = scmp.le.s32.totalorder 1, %s8
    %p113 = scmp.lt.s32.totalorder %s8, 5
    %p114 = pnand %p112, %p113
    %p115 = pneg %p114
    // Predicated region
    $region25: #{tpu_custom_call.1} parent=5 // pred_check
      _
    $region26: #{tpu_custom_call.1} parent=5 // pred_check_branch
      %117 = sbr.rel (%p114) target = $region28
    $region27: #{tpu_custom_call.1} parent=5 // pred_region
      %s118 = ssub.s32 %s8, 1
      %p119 = pneg %p29
      %p120 = pneg %p26
      %s121 = smul.u32 4, %s13
      %p122 = scmp.lt.s32.totalorder %s121, 15
      %s123 = scalar_select %p122, %s121, 15
      %s124 = smul.addr %s123, 8
      %s125 = scalar_lea.vmem %s1, %s124
      %p126 = pneg %p55
      %p127 = pneg %p52
      %p128 = pneg %p81
      %p129 = pneg %p78
      %s130 = smul.u32 4, %s13
      %p131 = scmp.lt.s32.totalorder %s130, 15
      %s132 = scalar_select %p131, %s130, 15
      %s133 = smul.addr %s132, 8
      %s134 = scalar_lea.vmem %s2, %s133
      %s135 = smul.u32 4, %s13
      %p136 = scmp.lt.s32.totalorder %s135, 15
      %s137 = scalar_select %p136, %s135, 15
      %s138 = smul.addr %s137, 8
      %s139 = scalar_lea.vmem %s1, %s138
      %s140 = smul.u32 4, %s13
      %s141 = smul.u32 4, %s13
      %p142 = scmp.lt.s32.totalorder %s141, 15
      %s143 = scalar_select %p142, %s141, 15
      %s144 = smul.addr %s143, 8
      %s145 = scalar_lea.vmem %s2, %s144
      %s146 = smul.u32 4, %s13
      %v147 = vld [vmem:[%s139] sm:$0xff]
      %v148 = vld [vmem:[%s139 + $0x8] sm:$0xff]
      %v149 = vld [vmem:[%s139 + $0x10] sm:$0xff]
      %v150 = vld [vmem:[%s139 + $0x18] sm:$0xff]
      %v151 = vld [vmem:[%s0] sm:$0xff]
      %v152 = vld [vmem:[%s0 + $0x8] sm:$0xff]
      %vm153 = vcmask 130048
      %v155 = vsel %vm153, %v147, 0
      %v158 = vsel %vm153, %v148, 0
      %v161 = vsel %vm153, %v149, 0
      %v164 = vsel %vm153, %v150, 0
      %166 = vmatprep.subr.mxu0 0.0
      %167 = vmatpush1.msra.mxu0 0.0
      %168 = vmatprep.subr.mxu0 0.0
      %169 = vmatpush1.msra.mxu0 0.0
      %170 = vmatprep.subr.mxu0 0.0
      %171 = vmatpush1.msra.mxu0 0.0
      %172 = vmatprep.subr.mxu0 0.0
      %173 = vmatpush1.msra.mxu0 0.0
      %174 = vmatprep.subr.mxu0 0.0
      %175 = vmatpush1.msra.mxu0 0.0
      %176 = vmatprep.subr.mxu0 0.0
      %177 = vmatpush1.msra.mxu0 0.0
      %178 = vmatprep.subr.mxu0 0.0
      %179 = vmatpush1.msra.mxu0 0.0
      %180 = vmatprep.subr.mxu0 0.0
      %181 = vmatpush1.msra.mxu0 0.0
      %182 = vmatprep.subr.mxu0 0.0
      %183 = vmatpush1.msra.mxu0 0.0
      %184 = vmatprep.subr.mxu0 0.0
      %185 = vmatpush1.msra.mxu0 0.0
      %186 = vmatprep.subr.mxu0 0.0
      %187 = vmatpush1.msra.mxu0 0.0
      %188 = vmatprep.subr.mxu0 0.0
      %189 = vmatpush1.msra.mxu0 0.0
      %190 = vmatprep.subr.mxu0 0.0
      %191 = vmatpush1.msra.mxu0 0.0
      %192 = vmatprep.subr.mxu0 0.0
      %193 = vmatpush1.msra.mxu0 0.0
      %194 = vmatprep.subr.mxu0 0.0
      %v195 = vand.u32 %v152, 4294901760
      %196 = vmatpush1.msra.mxu0 %v195
      %197 = vmatprep.subr.mxu0 0.0
      %v198 = vand.u32 %v151, 4294901760
      %199 = vmatpush1.msra.mxu0 %v198
      %200 = vmatprep.subr.mxu0 0.0
      %201 = vmatpush2.msra.mxu0 0.0
      %202 = vmatprep.subr.mxu0 0.0
      %203 = vmatpush2.msra.mxu0 0.0
      %204 = vmatprep.subr.mxu0 0.0
      %205 = vmatpush2.msra.mxu0 0.0
      %206 = vmatprep.subr.mxu0 0.0
      %207 = vmatpush2.msra.mxu0 0.0
      %208 = vmatprep.subr.mxu0 0.0
      %209 = vmatpush2.msra.mxu0 0.0
      %210 = vmatprep.subr.mxu0 0.0
      %211 = vmatpush2.msra.mxu0 0.0
      %212 = vmatprep.subr.mxu0 0.0
      %213 = vmatpush2.msra.mxu0 0.0
      %214 = vmatprep.subr.mxu0 0.0
      %215 = vmatpush2.msra.mxu0 0.0
      %216 = vmatprep.subr.mxu0 0.0
      %217 = vmatpush2.msra.mxu0 0.0
      %218 = vmatprep.subr.mxu0 0.0
      %219 = vmatpush2.msra.mxu0 0.0
      %220 = vmatprep.subr.mxu0 0.0
      %221 = vmatpush2.msra.mxu0 0.0
      %222 = vmatprep.subr.mxu0 0.0
      %223 = vmatpush2.msra.mxu0 0.0
      %224 = vmatprep.subr.mxu0 0.0
      %225 = vmatpush2.msra.mxu0 0.0
      %226 = vmatprep.subr.mxu0 0.0
      %227 = vmatpush2.msra.mxu0 0.0
      %228 = vmatprep.subr.mxu0 0.0
      %229 = vmatpush2.msra.mxu0 0.0
      %230 = vmatprep.subr.mxu0 0.0
      %231 = vmatpush2.msra.mxu0 0.0
      %232 = vmatprep.mubr.f32.mxu0 0.0
      %v233 = vand.u32 %v155, 4294901760
      %v234 = vsub.f32 %v155, %v233
      %v235 = vand.u32 %v234, 4294901760
      %v236 = vsub.f32 %v234, %v235
      %v237 = vand.u32 %v236, 4294901760
      %238 = vmatmul.mubr.f32.gmra.mxu0 %v237
      %v239 = vpop.f32.mrf.mxu0
      %v240 = vadd.f32 0.0, %v239
      %v241 = vpop.f32.mrf.mxu0
      %242 = vmatprep.mubr.f32.mxu0 0.0
      %v243 = vand.u32 %v158, 4294901760
      %v244 = vsub.f32 %v158, %v243
      %v245 = vand.u32 %v244, 4294901760
      %v246 = vsub.f32 %v244, %v245
      %v247 = vand.u32 %v246, 4294901760
      %248 = vmatmul.mubr.f32.gmra.mxu0 %v247
      %v249 = vpop.f32.mrf.mxu0
      %v250 = vadd.f32 0.0, %v249
      %v251 = vpop.f32.mrf.mxu0
      %252 = vmatprep.mubr.f32.mxu0 0.0
      %v253 = vand.u32 %v161, 4294901760
      %v254 = vsub.f32 %v161, %v253
      %v255 = vand.u32 %v254, 4294901760
      %v256 = vsub.f32 %v254, %v255
      %v257 = vand.u32 %v256, 4294901760
      %258 = vmatmul.mubr.f32.gmra.mxu0 %v257
      %v259 = vpop.f32.mrf.mxu0
      %v260 = vadd.f32 0.0, %v259
      %v261 = vpop.f32.mrf.mxu0
      %262 = vmatprep.mubr.f32.mxu0 0.0
      %v263 = vand.u32 %v164, 4294901760
      %v264 = vsub.f32 %v164, %v263
      %v265 = vand.u32 %v264, 4294901760
      %v266 = vsub.f32 %v264, %v265
      %v267 = vand.u32 %v266, 4294901760
      %268 = vmatmul.mubr.f32.gmra.mxu0 %v267
      %v269 = vpop.f32.mrf.mxu0
      %v270 = vadd.f32 0.0, %v269
      %v271 = vpop.f32.mrf.mxu0
      %272 = vdwg.mxu0
      %273 = vmatprep.subr.mxu0 0.0
      %274 = vmatpush1.msra.mxu0 0.0
      %275 = vmatprep.subr.mxu0 0.0
      %276 = vmatpush1.msra.mxu0 0.0
      %277 = vmatprep.subr.mxu0 0.0
      %278 = vmatpush1.msra.mxu0 0.0
      %279 = vmatprep.subr.mxu0 0.0
      %280 = vmatpush1.msra.mxu0 0.0
      %281 = vmatprep.subr.mxu0 0.0
      %282 = vmatpush1.msra.mxu0 0.0
      %283 = vmatprep.subr.mxu0 0.0
      %284 = vmatpush1.msra.mxu0 0.0
      %285 = vmatprep.subr.mxu0 0.0
      %286 = vmatpush1.msra.mxu0 0.0
      %287 = vmatprep.subr.mxu0 0.0
      %288 = vmatpush1.msra.mxu0 0.0
      %289 = vmatprep.subr.mxu0 0.0
      %290 = vmatpush1.msra.mxu0 0.0
      %291 = vmatprep.subr.mxu0 0.0
      %292 = vmatpush1.msra.mxu0 0.0
      %293 = vmatprep.subr.mxu0 0.0
      %294 = vmatpush1.msra.mxu0 0.0
      %295 = vmatprep.subr.mxu0 0.0
      %296 = vmatpush1.msra.mxu0 0.0
      %297 = vmatprep.subr.mxu0 0.0
      %298 = vmatpush1.msra.mxu0 0.0
      %299 = vmatprep.subr.mxu0 0.0
      %300 = vmatpush1.msra.mxu0 0.0
      %301 = vmatprep.subr.mxu0 0.0
      %v302 = vand.u32 %v152, 4294901760
      %v303 = vsub.f32 %v152, %v302
      %v304 = vand.u32 %v303, 4294901760
      %v305 = vsub.f32 %v303, %v304
      %v306 = vand.u32 %v305, 4294901760
      %307 = vmatpush1.msra.mxu0 %v306
      %308 = vmatprep.subr.mxu0 0.0
      %v309 = vand.u32 %v151, 4294901760
      %v310 = vsub.f32 %v151, %v309
      %v311 = vand.u32 %v310, 4294901760
      %v312 = vsub.f32 %v310, %v311
      %v313 = vand.u32 %v312, 4294901760
      %314 = vmatpush1.msra.mxu0 %v313
      %315 = vmatprep.subr.mxu0 0.0
      %316 = vmatpush2.msra.mxu0 0.0
      %317 = vmatprep.subr.mxu0 0.0
      %318 = vmatpush2.msra.mxu0 0.0
      %319 = vmatprep.subr.mxu0 0.0
      %320 = vmatpush2.msra.mxu0 0.0
      %321 = vmatprep.subr.mxu0 0.0
      %322 = vmatpush2.msra.mxu0 0.0
      %323 = vmatprep.subr.mxu0 0.0
      %324 = vmatpush2.msra.mxu0 0.0
      %325 = vmatprep.subr.mxu0 0.0
      %326 = vmatpush2.msra.mxu0 0.0
      %327 = vmatprep.subr.mxu0 0.0
      %328 = vmatpush2.msra.mxu0 0.0
      %329 = vmatprep.subr.mxu0 0.0
      %330 = vmatpush2.msra.mxu0 0.0
      %331 = vmatprep.subr.mxu0 0.0
      %332 = vmatpush2.msra.mxu0 0.0
      %333 = vmatprep.subr.mxu0 0.0
      %334 = vmatpush2.msra.mxu0 0.0
      %335 = vmatprep.subr.mxu0 0.0
      %336 = vmatpush2.msra.mxu0 0.0
      %337 = vmatprep.subr.mxu0 0.0
      %338 = vmatpush2.msra.mxu0 0.0
      %339 = vmatprep.subr.mxu0 0.0
      %340 = vmatpush2.msra.mxu0 0.0
      %341 = vmatprep.subr.mxu0 0.0
      %342 = vmatpush2.msra.mxu0 0.0
      %343 = vmatprep.subr.mxu0 0.0
      %344 = vmatpush2.msra.mxu0 0.0
      %345 = vmatprep.subr.mxu0 0.0
      %346 = vmatpush2.msra.mxu0 0.0
      %347 = vmatprep.mubr.f32.mxu0 0.0
      %v348 = vand.u32 %v155, 4294901760
      %349 = vmatmul.mubr.f32.gmra.mxu0 %v348
      %v350 = vpop.f32.mrf.mxu0
      %v351 = vadd.f32 %v240, %v350
      %v352 = vpop.f32.mrf.mxu0
      %353 = vmatprep.mubr.f32.mxu0 0.0
      %v354 = vand.u32 %v158, 4294901760
      %355 = vmatmul.mubr.f32.gmra.mxu0 %v354
      %v356 = vpop.f32.mrf.mxu0
      %v357 = vadd.f32 %v250, %v356
      %v358 = vpop.f32.mrf.mxu0
      %359 = vmatprep.mubr.f32.mxu0 0.0
      %v360 = vand.u32 %v161, 4294901760
      %361 = vmatmul.mubr.f32.gmra.mxu0 %v360
      %v362 = vpop.f32.mrf.mxu0
      %v363 = vadd.f32 %v260, %v362
      %v364 = vpop.f32.mrf.mxu0
      %365 = vmatprep.mubr.f32.mxu0 0.0
      %v366 = vand.u32 %v164, 4294901760
      %367 = vmatmul.mubr.f32.gmra.mxu0 %v366
      %v368 = vpop.f32.mrf.mxu0
      %v369 = vadd.f32 %v270, %v368
      %v370 = vpop.f32.mrf.mxu0
      %371 = vdwg.mxu0
      %372 = vmatprep.subr.mxu0 0.0
      %373 = vmatpush1.msra.mxu0 0.0
      %374 = vmatprep.subr.mxu0 0.0
      %375 = vmatpush1.msra.mxu0 0.0
      %376 = vmatprep.subr.mxu0 0.0
      %377 = vmatpush1.msra.mxu0 0.0
      %378 = vmatprep.subr.mxu0 0.0
      %379 = vmatpush1.msra.mxu0 0.0
      %380 = vmatprep.subr.mxu0 0.0
      %381 = vmatpush1.msra.mxu0 0.0
      %382 = vmatprep.subr.mxu0 0.0
      %383 = vmatpush1.msra.mxu0 0.0
      %384 = vmatprep.subr.mxu0 0.0
      %385 = vmatpush1.msra.mxu0 0.0
      %386 = vmatprep.subr.mxu0 0.0
      %387 = vmatpush1.msra.mxu0 0.0
      %388 = vmatprep.subr.mxu0 0.0
      %389 = vmatpush1.msra.mxu0 0.0
      %390 = vmatprep.subr.mxu0 0.0
      %391 = vmatpush1.msra.mxu0 0.0
      %392 = vmatprep.subr.mxu0 0.0
      %393 = vmatpush1.msra.mxu0 0.0
      %394 = vmatprep.subr.mxu0 0.0
      %395 = vmatpush1.msra.mxu0 0.0
      %396 = vmatprep.subr.mxu0 0.0
      %397 = vmatpush1.msra.mxu0 0.0
      %398 = vmatprep.subr.mxu0 0.0
      %399 = vmatpush1.msra.mxu0 0.0
      %400 = vmatprep.subr.mxu0 0.0
      %v401 = vand.u32 %v152, 4294901760
      %v402 = vsub.f32 %v152, %v401
      %403 = vmatpush1.msra.mxu0 %v402
      %404 = vmatprep.subr.mxu0 0.0
      %v405 = vand.u32 %v151, 4294901760
      %v406 = vsub.f32 %v151, %v405
      %407 = vmatpush1.msra.mxu0 %v406
      %408 = vmatprep.subr.mxu0 0.0
      %409 = vmatpush2.msra.mxu0 0.0
      %410 = vmatprep.subr.mxu0 0.0
      %411 = vmatpush2.msra.mxu0 0.0
      %412 = vmatprep.subr.mxu0 0.0
      %413 = vmatpush2.msra.mxu0 0.0
      %414 = vmatprep.subr.mxu0 0.0
      %415 = vmatpush2.msra.mxu0 0.0
      %416 = vmatprep.subr.mxu0 0.0
      %417 = vmatpush2.msra.mxu0 0.0
      %418 = vmatprep.subr.mxu0 0.0
      %419 = vmatpush2.msra.mxu0 0.0
      %420 = vmatprep.subr.mxu0 0.0
      %421 = vmatpush2.msra.mxu0 0.0
      %422 = vmatprep.subr.mxu0 0.0
      %423 = vmatpush2.msra.mxu0 0.0
      %424 = vmatprep.subr.mxu0 0.0
      %425 = vmatpush2.msra.mxu0 0.0
      %426 = vmatprep.subr.mxu0 0.0
      %427 = vmatpush2.msra.mxu0 0.0
      %428 = vmatprep.subr.mxu0 0.0
      %429 = vmatpush2.msra.mxu0 0.0
      %430 = vmatprep.subr.mxu0 0.0
      %431 = vmatpush2.msra.mxu0 0.0
      %432 = vmatprep.subr.mxu0 0.0
      %433 = vmatpush2.msra.mxu0 0.0
      %434 = vmatprep.subr.mxu0 0.0
      %435 = vmatpush2.msra.mxu0 0.0
      %436 = vmatprep.subr.mxu0 0.0
      %437 = vmatpush2.msra.mxu0 0.0
      %438 = vmatprep.subr.mxu0 0.0
      %439 = vmatpush2.msra.mxu0 0.0
      %440 = vmatprep.mubr.f32.mxu0 0.0
      %v441 = vand.u32 %v155, 4294901760
      %v442 = vsub.f32 %v155, %v441
      %443 = vmatmul.mubr.f32.gmra.mxu0 %v442
      %v444 = vpop.f32.mrf.mxu0
      %v445 = vadd.f32 %v351, %v444
      %v446 = vpop.f32.mrf.mxu0
      %447 = vmatprep.mubr.f32.mxu0 0.0
      %v448 = vand.u32 %v158, 4294901760
      %v449 = vsub.f32 %v158, %v448
      %450 = vmatmul.mubr.f32.gmra.mxu0 %v449
      %v451 = vpop.f32.mrf.mxu0
      %v452 = vadd.f32 %v357, %v451
      %v453 = vpop.f32.mrf.mxu0
      %454 = vmatprep.mubr.f32.mxu0 0.0
      %v455 = vand.u32 %v161, 4294901760
      %v456 = vsub.f32 %v161, %v455
      %457 = vmatmul.mubr.f32.gmra.mxu0 %v456
      %v458 = vpop.f32.mrf.mxu0
      %v459 = vadd.f32 %v363, %v458
      %v460 = vpop.f32.mrf.mxu0
      %461 = vmatprep.mubr.f32.mxu0 0.0
      %v462 = vand.u32 %v164, 4294901760
      %v463 = vsub.f32 %v164, %v462
      %464 = vmatmul.mubr.f32.gmra.mxu0 %v463
      %v465 = vpop.f32.mrf.mxu0
      %v466 = vadd.f32 %v369, %v465
      %v467 = vpop.f32.mrf.mxu0
      %468 = vdwg.mxu0
      %469 = vmatprep.subr.mxu0 0.0
      %470 = vmatpush1.msra.mxu0 0.0
      %471 = vmatprep.subr.mxu0 0.0
      %472 = vmatpush1.msra.mxu0 0.0
      %473 = vmatprep.subr.mxu0 0.0
      %474 = vmatpush1.msra.mxu0 0.0
      %475 = vmatprep.subr.mxu0 0.0
      %476 = vmatpush1.msra.mxu0 0.0
      %477 = vmatprep.subr.mxu0 0.0
      %478 = vmatpush1.msra.mxu0 0.0
      %479 = vmatprep.subr.mxu0 0.0
      %480 = vmatpush1.msra.mxu0 0.0
      %481 = vmatprep.subr.mxu0 0.0
      %482 = vmatpush1.msra.mxu0 0.0
      %483 = vmatprep.subr.mxu0 0.0
      %484 = vmatpush1.msra.mxu0 0.0
      %485 = vmatprep.subr.mxu0 0.0
      %486 = vmatpush1.msra.mxu0 0.0
      %487 = vmatprep.subr.mxu0 0.0
      %488 = vmatpush1.msra.mxu0 0.0
      %489 = vmatprep.subr.mxu0 0.0
      %490 = vmatpush1.msra.mxu0 0.0
      %491 = vmatprep.subr.mxu0 0.0
      %492 = vmatpush1.msra.mxu0 0.0
      %493 = vmatprep.subr.mxu0 0.0
      %494 = vmatpush1.msra.mxu0 0.0
      %495 = vmatprep.subr.mxu0 0.0
      %496 = vmatpush1.msra.mxu0 0.0
      %497 = vmatprep.subr.mxu0 0.0
      %v498 = vand.u32 %v152, 4294901760
      %499 = vmatpush1.msra.mxu0 %v498
      %500 = vmatprep.subr.mxu0 0.0
      %v501 = vand.u32 %v151, 4294901760
      %502 = vmatpush1.msra.mxu0 %v501
      %503 = vmatprep.subr.mxu0 0.0
      %504 = vmatpush2.msra.mxu0 0.0
      %505 = vmatprep.subr.mxu0 0.0
      %506 = vmatpush2.msra.mxu0 0.0
      %507 = vmatprep.subr.mxu0 0.0
      %508 = vmatpush2.msra.mxu0 0.0
      %509 = vmatprep.subr.mxu0 0.0
      %510 = vmatpush2.msra.mxu0 0.0
      %511 = vmatprep.subr.mxu0 0.0
      %512 = vmatpush2.msra.mxu0 0.0
      %513 = vmatprep.subr.mxu0 0.0
      %514 = vmatpush2.msra.mxu0 0.0
      %515 = vmatprep.subr.mxu0 0.0
      %516 = vmatpush2.msra.mxu0 0.0
      %517 = vmatprep.subr.mxu0 0.0
      %518 = vmatpush2.msra.mxu0 0.0
      %519 = vmatprep.subr.mxu0 0.0
      %520 = vmatpush2.msra.mxu0 0.0
      %521 = vmatprep.subr.mxu0 0.0
      %522 = vmatpush2.msra.mxu0 0.0
      %523 = vmatprep.subr.mxu0 0.0
      %524 = vmatpush2.msra.mxu0 0.0
      %525 = vmatprep.subr.mxu0 0.0
      %526 = vmatpush2.msra.mxu0 0.0
      %527 = vmatprep.subr.mxu0 0.0
      %528 = vmatpush2.msra.mxu0 0.0
      %529 = vmatprep.subr.mxu0 0.0
      %530 = vmatpush2.msra.mxu0 0.0
      %531 = vmatprep.subr.mxu0 0.0
      %532 = vmatpush2.msra.mxu0 0.0
      %533 = vmatprep.subr.mxu0 0.0
      %534 = vmatpush2.msra.mxu0 0.0
      %535 = vmatprep.mubr.f32.mxu0 0.0
      %v536 = vand.u32 %v155, 4294901760
      %v537 = vsub.f32 %v155, %v536
      %v538 = vand.u32 %v537, 4294901760
      %539 = vmatmul.mubr.f32.gmra.mxu0 %v538
      %v540 = vpop.f32.mrf.mxu0
      %v541 = vadd.f32 %v445, %v540
      %v542 = vpop.f32.mrf.mxu0
      %543 = vmatprep.mubr.f32.mxu0 0.0
      %v544 = vand.u32 %v158, 4294901760
      %v545 = vsub.f32 %v158, %v544
      %v546 = vand.u32 %v545, 4294901760
      %547 = vmatmul.mubr.f32.gmra.mxu0 %v546
      %v548 = vpop.f32.mrf.mxu0
      %v549 = vadd.f32 %v452, %v548
      %v550 = vpop.f32.mrf.mxu0
      %551 = vmatprep.mubr.f32.mxu0 0.0
      %v552 = vand.u32 %v161, 4294901760
      %v553 = vsub.f32 %v161, %v552
      %v554 = vand.u32 %v553, 4294901760
      %555 = vmatmul.mubr.f32.gmra.mxu0 %v554
      %v556 = vpop.f32.mrf.mxu0
      %v557 = vadd.f32 %v459, %v556
      %v558 = vpop.f32.mrf.mxu0
      %559 = vmatprep.mubr.f32.mxu0 0.0
      %v560 = vand.u32 %v164, 4294901760
      %v561 = vsub.f32 %v164, %v560
      %v562 = vand.u32 %v561, 4294901760
      %563 = vmatmul.mubr.f32.gmra.mxu0 %v562
      %v564 = vpop.f32.mrf.mxu0
      %v565 = vadd.f32 %v466, %v564
      %v566 = vpop.f32.mrf.mxu0
      %567 = vdwg.mxu0
      %568 = vmatprep.subr.mxu0 0.0
      %569 = vmatpush1.msra.mxu0 0.0
      %570 = vmatprep.subr.mxu0 0.0
      %571 = vmatpush1.msra.mxu0 0.0
      %572 = vmatprep.subr.mxu0 0.0
      %573 = vmatpush1.msra.mxu0 0.0
      %574 = vmatprep.subr.mxu0 0.0
      %575 = vmatpush1.msra.mxu0 0.0
      %576 = vmatprep.subr.mxu0 0.0
      %577 = vmatpush1.msra.mxu0 0.0
      %578 = vmatprep.subr.mxu0 0.0
      %579 = vmatpush1.msra.mxu0 0.0
      %580 = vmatprep.subr.mxu0 0.0
      %581 = vmatpush1.msra.mxu0 0.0
      %582 = vmatprep.subr.mxu0 0.0
      %583 = vmatpush1.msra.mxu0 0.0
      %584 = vmatprep.subr.mxu0 0.0
      %585 = vmatpush1.msra.mxu0 0.0
      %586 = vmatprep.subr.mxu0 0.0
      %587 = vmatpush1.msra.mxu0 0.0
      %588 = vmatprep.subr.mxu0 0.0
      %589 = vmatpush1.msra.mxu0 0.0
      %590 = vmatprep.subr.mxu0 0.0
      %591 = vmatpush1.msra.mxu0 0.0
      %592 = vmatprep.subr.mxu0 0.0
      %593 = vmatpush1.msra.mxu0 0.0
      %594 = vmatprep.subr.mxu0 0.0
      %595 = vmatpush1.msra.mxu0 0.0
      %596 = vmatprep.subr.mxu0 0.0
      %v597 = vand.u32 %v152, 4294901760
      %v598 = vsub.f32 %v152, %v597
      %v599 = vand.u32 %v598, 4294901760
      %600 = vmatpush1.msra.mxu0 %v599
      %601 = vmatprep.subr.mxu0 0.0
      %v602 = vand.u32 %v151, 4294901760
      %v603 = vsub.f32 %v151, %v602
      %v604 = vand.u32 %v603, 4294901760
      %605 = vmatpush1.msra.mxu0 %v604
      %606 = vmatprep.subr.mxu0 0.0
      %607 = vmatpush2.msra.mxu0 0.0
      %608 = vmatprep.subr.mxu0 0.0
      %609 = vmatpush2.msra.mxu0 0.0
      %610 = vmatprep.subr.mxu0 0.0
      %611 = vmatpush2.msra.mxu0 0.0
      %612 = vmatprep.subr.mxu0 0.0
      %613 = vmatpush2.msra.mxu0 0.0
      %614 = vmatprep.subr.mxu0 0.0
      %615 = vmatpush2.msra.mxu0 0.0
      %616 = vmatprep.subr.mxu0 0.0
      %617 = vmatpush2.msra.mxu0 0.0
      %618 = vmatprep.subr.mxu0 0.0
      %619 = vmatpush2.msra.mxu0 0.0
      %620 = vmatprep.subr.mxu0 0.0
      %621 = vmatpush2.msra.mxu0 0.0
      %622 = vmatprep.subr.mxu0 0.0
      %623 = vmatpush2.msra.mxu0 0.0
      %624 = vmatprep.subr.mxu0 0.0
      %625 = vmatpush2.msra.mxu0 0.0
      %626 = vmatprep.subr.mxu0 0.0
      %627 = vmatpush2.msra.mxu0 0.0
      %628 = vmatprep.subr.mxu0 0.0
      %629 = vmatpush2.msra.mxu0 0.0
      %630 = vmatprep.subr.mxu0 0.0
      %631 = vmatpush2.msra.mxu0 0.0
      %632 = vmatprep.subr.mxu0 0.0
      %633 = vmatpush2.msra.mxu0 0.0
      %634 = vmatprep.subr.mxu0 0.0
      %635 = vmatpush2.msra.mxu0 0.0
      %636 = vmatprep.subr.mxu0 0.0
      %637 = vmatpush2.msra.mxu0 0.0
      %638 = vmatprep.mubr.f32.mxu0 0.0
      %v639 = vand.u32 %v155, 4294901760
      %640 = vmatmul.mubr.f32.gmra.mxu0 %v639
      %v641 = vpop.f32.mrf.mxu0
      %v642 = vadd.f32 %v541, %v641
      %v643 = vpop.f32.mrf.mxu0
      %644 = vmatprep.mubr.f32.mxu0 0.0
      %v645 = vand.u32 %v158, 4294901760
      %646 = vmatmul.mubr.f32.gmra.mxu0 %v645
      %v647 = vpop.f32.mrf.mxu0
      %v648 = vadd.f32 %v549, %v647
      %v649 = vpop.f32.mrf.mxu0
      %650 = vmatprep.mubr.f32.mxu0 0.0
      %v651 = vand.u32 %v161, 4294901760
      %652 = vmatmul.mubr.f32.gmra.mxu0 %v651
      %v653 = vpop.f32.mrf.mxu0
      %v654 = vadd.f32 %v557, %v653
      %v655 = vpop.f32.mrf.mxu0
      %656 = vmatprep.mubr.f32.mxu0 0.0
      %v657 = vand.u32 %v164, 4294901760
      %658 = vmatmul.mubr.f32.gmra.mxu0 %v657
      %v659 = vpop.f32.mrf.mxu0
      %v660 = vadd.f32 %v565, %v659
      %v661 = vpop.f32.mrf.mxu0
      %662 = vdwg.mxu0
      %663 = vmatprep.subr.mxu0 0.0
      %664 = vmatpush1.msra.mxu0 0.0
      %665 = vmatprep.subr.mxu0 0.0
      %666 = vmatpush1.msra.mxu0 0.0
      %667 = vmatprep.subr.mxu0 0.0
      %668 = vmatpush1.msra.mxu0 0.0
      %669 = vmatprep.subr.mxu0 0.0
      %670 = vmatpush1.msra.mxu0 0.0
      %671 = vmatprep.subr.mxu0 0.0
      %672 = vmatpush1.msra.mxu0 0.0
      %673 = vmatprep.subr.mxu0 0.0
      %674 = vmatpush1.msra.mxu0 0.0
      %675 = vmatprep.subr.mxu0 0.0
      %676 = vmatpush1.msra.mxu0 0.0
      %677 = vmatprep.subr.mxu0 0.0
      %678 = vmatpush1.msra.mxu0 0.0
      %679 = vmatprep.subr.mxu0 0.0
      %680 = vmatpush1.msra.mxu0 0.0
      %681 = vmatprep.subr.mxu0 0.0
      %682 = vmatpush1.msra.mxu0 0.0
      %683 = vmatprep.subr.mxu0 0.0
      %684 = vmatpush1.msra.mxu0 0.0
      %685 = vmatprep.subr.mxu0 0.0
      %686 = vmatpush1.msra.mxu0 0.0
      %687 = vmatprep.subr.mxu0 0.0
      %688 = vmatpush1.msra.mxu0 0.0
      %689 = vmatprep.subr.mxu0 0.0
      %690 = vmatpush1.msra.mxu0 0.0
      %691 = vmatprep.subr.mxu0 0.0
      %v692 = vand.u32 %v152, 4294901760
      %693 = vmatpush1.msra.mxu0 %v692
      %694 = vmatprep.subr.mxu0 0.0
      %v695 = vand.u32 %v151, 4294901760
      %696 = vmatpush1.msra.mxu0 %v695
      %697 = vmatprep.subr.mxu0 0.0
      %698 = vmatpush2.msra.mxu0 0.0
      %699 = vmatprep.subr.mxu0 0.0
      %700 = vmatpush2.msra.mxu0 0.0
      %701 = vmatprep.subr.mxu0 0.0
      %702 = vmatpush2.msra.mxu0 0.0
      %703 = vmatprep.subr.mxu0 0.0
      %704 = vmatpush2.msra.mxu0 0.0
      %705 = vmatprep.subr.mxu0 0.0
      %706 = vmatpush2.msra.mxu0 0.0
      %707 = vmatprep.subr.mxu0 0.0
      %708 = vmatpush2.msra.mxu0 0.0
      %709 = vmatprep.subr.mxu0 0.0
      %710 = vmatpush2.msra.mxu0 0.0
      %711 = vmatprep.subr.mxu0 0.0
      %712 = vmatpush2.msra.mxu0 0.0
      %713 = vmatprep.subr.mxu0 0.0
      %714 = vmatpush2.msra.mxu0 0.0
      %715 = vmatprep.subr.mxu0 0.0
      %716 = vmatpush2.msra.mxu0 0.0
      %717 = vmatprep.subr.mxu0 0.0
      %718 = vmatpush2.msra.mxu0 0.0
      %719 = vmatprep.subr.mxu0 0.0
      %720 = vmatpush2.msra.mxu0 0.0
      %721 = vmatprep.subr.mxu0 0.0
      %722 = vmatpush2.msra.mxu0 0.0
      %723 = vmatprep.subr.mxu0 0.0
      %724 = vmatpush2.msra.mxu0 0.0
      %725 = vmatprep.subr.mxu0 0.0
      %726 = vmatpush2.msra.mxu0 0.0
      %727 = vmatprep.subr.mxu0 0.0
      %728 = vmatpush2.msra.mxu0 0.0
      %729 = vmatprep.mubr.f32.mxu0 0.0
      %v730 = vand.u32 %v155, 4294901760
      %731 = vmatmul.mubr.f32.gmra.mxu0 %v730
      %v732 = vpop.f32.mrf.mxu0
      %v733 = vadd.f32 %v642, %v732
      %v734 = vpop.f32.mrf.mxu0
      %735 = vmatprep.mubr.f32.mxu0 0.0
      %v736 = vand.u32 %v158, 4294901760
      %737 = vmatmul.mubr.f32.gmra.mxu0 %v736
      %v738 = vpop.f32.mrf.mxu0
      %v739 = vadd.f32 %v648, %v738
      %v740 = vpop.f32.mrf.mxu0
      %741 = vmatprep.mubr.f32.mxu0 0.0
      %v742 = vand.u32 %v161, 4294901760
      %743 = vmatmul.mubr.f32.gmra.mxu0 %v742
      %v744 = vpop.f32.mrf.mxu0
      %v745 = vadd.f32 %v654, %v744
      %v746 = vpop.f32.mrf.mxu0
      %747 = vmatprep.mubr.f32.mxu0 0.0
      %v748 = vand.u32 %v164, 4294901760
      %749 = vmatmul.mubr.f32.gmra.mxu0 %v748
      %v750 = vpop.f32.mrf.mxu0
      %v751 = vadd.f32 %v660, %v750
      %v752 = vpop.f32.mrf.mxu0
      %753 = vdwg.mxu0
      %v754 = vrot.slane %v733, 7
      %v755 = vrot.slane %v739, 7
      %v756 = vrot.slane %v745, 7
      %v757 = vrot.slane %v751, 7
      %v758 = vlaneseq
      %v759 = vshrl.u32 %v758, 7
      %vm760 = vcmp.lt.s32.totalorder %v759, 1
      %v761 = vsel %vm760, %v756, %v757
      %v762 = vsel %vm760, %v755, %v756
      %v763 = vsel %vm760, %v754, %v755
      %v764 = vsel %vm760, %v757, %v754
      %v765 = vrot.slane %v733, 1
      %v766 = vrot.slane %v739, 1
      %v767 = vrot.slane %v745, 1
      %v768 = vrot.slane %v751, 1
      %vm769 = vcmp.lt.s32.totalorder %v759, 7
      %v770 = vsel %vm769, %v767, %v768
      %v771 = vsel %vm769, %v766, %v767
      %v772 = vsel %vm769, %v765, %v766
      %v773 = vsel %vm769, %v768, %v765
      %v774 = vadd.s32 %v759, 8
      %v775 = vadd.s32 %v759, 16
      %v776 = vadd.s32 %v759, 24
      %vm777 = vcmp.lt.s32.totalorder %v759, 0
      %v778 = vsub.s32 0, %v759
      %v779 = vsel %vm777, %v778, %v759
      %v780 = vshrl.u32 %v779, 4
      %v781 = vand.u32 %v779, 15
      %v782 = vsub.s32 0, %v781
      %v783 = vsel %vm777, %v782, %v781
      %vm784 = vcmp.lt.s32.totalorder %v774, 0
      %v785 = vsub.s32 0, %v774
      %v786 = vsel %vm784, %v785, %v774
      %v787 = vshrl.u32 %v786, 4
      %v788 = vand.u32 %v786, 15
      %v789 = vsub.s32 0, %v788
      %v790 = vsel %vm784, %v789, %v788
      %vm791 = vcmp.lt.s32.totalorder %v775, 0
      %v792 = vsub.s32 0, %v775
      %v793 = vsel %vm791, %v792, %v775
      %v794 = vshrl.u32 %v793, 4
      %v795 = vand.u32 %v793, 15
      %v796 = vsub.s32 0, %v795
      %v797 = vsel %vm791, %v796, %v795
      %vm798 = vcmp.lt.s32.totalorder %v776, 0
      %v799 = vsub.s32 0, %v776
      %v800 = vsel %vm798, %v799, %v776
      %v801 = vshrl.u32 %v800, 4
      %v802 = vand.u32 %v800, 15
      %v803 = vsub.s32 0, %v802
      %v804 = vsel %vm798, %v803, %v802
      %vm805 = vcmp.ne.s32.totalorder %v783, 0
      %vm806 = vcmp.ne.s32.totalorder %v790, 0
      %vm807 = vcmp.ne.s32.totalorder %v797, 0
      %vm808 = vcmp.ne.s32.totalorder %v804, 0
      %vm809 = vcmp.lt.s32.totalorder %v783, 0
      %vm810 = vcmp.lt.s32.totalorder %v790, 0
      %vm811 = vcmp.lt.s32.totalorder %v797, 0
      %vm812 = vcmp.lt.s32.totalorder %v804, 0
      %vm813 = vmand %vm809, %vm805
      %vm814 = vmand %vm810, %vm806
      %vm815 = vmand %vm811, %vm807
      %vm816 = vmand %vm812, %vm808
      %v817 = vadd.s32 %v783, 16
      %v818 = vadd.s32 %v790, 16
      %v819 = vadd.s32 %v797, 16
      %v820 = vadd.s32 %v804, 16
      %v821 = vsel %vm813, %v817, %v783
      %v822 = vsel %vm814, %v818, %v790
      %v823 = vsel %vm815, %v819, %v797
      %v824 = vsel %vm816, %v820, %v804
      %vm825 = vcmp.eq.s32.totalorder %v821, 0
      %vm826 = vcmp.eq.s32.totalorder %v822, 0
      %vm827 = vcmp.eq.s32.totalorder %v823, 0
      %vm828 = vcmp.eq.s32.totalorder %v824, 0
      %v829 = vsel %vm825, 1, 0
      %v830 = vsel %vm826, 1, 0
      %v831 = vsel %vm827, 1, 0
      %v832 = vsel %vm828, 1, 0
      %vm833 = vcmp.eq.s32.totalorder %v829, 1
      %vm834 = vcmp.eq.s32.totalorder %v830, 1
      %vm835 = vcmp.eq.s32.totalorder %v831, 1
      %vm836 = vcmp.eq.s32.totalorder %v832, 1
      %v837 = vsel %vm833, 0.0, %v764
      %v838 = vsel %vm834, 0.0, %v763
      %v839 = vsel %vm835, 0.0, %v762
      %v840 = vsel %vm836, 0.0, %v761
      %vm841 = vcmp.eq.s32.totalorder %v821, 15
      %vm842 = vcmp.eq.s32.totalorder %v822, 15
      %vm843 = vcmp.eq.s32.totalorder %v823, 15
      %vm844 = vcmp.eq.s32.totalorder %v824, 15
      %v845 = vsel %vm841, 1, 0
      %v846 = vsel %vm842, 1, 0
      %v847 = vsel %vm843, 1, 0
      %v848 = vsel %vm844, 1, 0
      %vm849 = vcmp.eq.s32.totalorder %v845, 1
      %vm850 = vcmp.eq.s32.totalorder %v846, 1
      %vm851 = vcmp.eq.s32.totalorder %v847, 1
      %vm852 = vcmp.eq.s32.totalorder %v848, 1
      %v853 = vsel %vm849, 0.0, %v772
      %v854 = vsel %vm850, 0.0, %v771
      %v855 = vsel %vm851, 0.0, %v770
      %v856 = vsel %vm852, 0.0, %v773
      %v857 = vmul.f32 %v733, 0.375
      %v858 = vmul.f32 %v739, 0.375
      %v859 = vmul.f32 %v745, 0.375
      %v860 = vmul.f32 %v751, 0.375
      %v861 = vmul.f32 %v837, 0.125
      %v862 = vmul.f32 %v838, 0.125
      %v863 = vmul.f32 %v839, 0.125
      %v864 = vmul.f32 %v840, 0.125
      %v865 = vadd.f32 %v857, %v861
      %v866 = vadd.f32 %v858, %v862
      %v867 = vadd.f32 %v859, %v863
      %v868 = vadd.f32 %v860, %v864
      %v869 = vmul.f32 %v853, 0.125
      %v870 = vmul.f32 %v854, 0.125
      %v871 = vmul.f32 %v855, 0.125
      %v872 = vmul.f32 %v856, 0.125
      %v873 = vadd.f32 %v857, %v869
      %v874 = vadd.f32 %v858, %v870
      %v875 = vadd.f32 %v859, %v871
      %v876 = vadd.f32 %v860, %v872
      %vm877 = vcmask 261120
      %878 = vst.msk [vmem:[%s145] sm:$0xff] %vm877, %v865
      %879 = vst.msk [vmem:[%s145 + $0x8] sm:$0xff] %vm877, %v866
      %880 = vst.msk [vmem:[%s145 + $0x10] sm:$0xff] %vm877, %v867
      %881 = vst.msk [vmem:[%s145 + $0x18] sm:$0xff] %vm877, %v868
      %886 = vrot.lane.b32.xlu0 %v873, 32
      %v887 = vpop.permute.xlu0 %886
      %888 = vrot.lane.b32.xlu0 %v874, 32
      %v889 = vpop.permute.xlu0 %888
      %890 = vrot.lane.b32.xlu0 %v875, 32
      %v891 = vpop.permute.xlu0 %890
      %892 = vrot.lane.b32.xlu0 %v876, 32
      %v893 = vpop.permute.xlu0 %892
      %vm898 = vcmask 523520
      %899 = vst.msk [vmem:[%s145] sm:$0xff] %vm898, %v887
      %900 = vst.msk [vmem:[%s145 + $0x8] sm:$0xff] %vm898, %v889
      %901 = vst.msk [vmem:[%s145 + $0x10] sm:$0xff] %vm898, %v891
      %902 = vst.msk [vmem:[%s145 + $0x18] sm:$0xff] %vm898, %v893
      %s903 = smul.u32 4, %s13
      %p904 = scmp.lt.s32.totalorder %s903, 15
      %s905 = scalar_select %p904, %s903, 15
      %s906 = smul.addr %s905, 8
      %s907 = scalar_lea.vmem %s2, %s906
      // Predicated region
      $region29: #{tpu_custom_call.1} parent=27 // pred_check
        %p908 = pneg %p78
      $region30: #{tpu_custom_call.1} parent=27 // pred_check_branch
        %910 = sbr.rel (%p908) target = $region32
      $region31: #{tpu_custom_call.1} parent=27 // pred_region
        %s911 = smul.u32 4, %s13
      $region32: #{tpu_custom_call.1} parent=27 // pred_fallthru
        _
    $region28: #{tpu_custom_call.1} parent=5 // pred_fallthru
      _
    %p912 = scmp.le.s32.totalorder 2, %s8
    // Predicated region
    $region33: #{tpu_custom_call.1} parent=5 // pred_check
      %p913 = pneg %p912
    $region34: #{tpu_custom_call.1} parent=5 // pred_check_branch
      %915 = sbr.rel (%p913) target = $region36
    $region35: #{tpu_custom_call.1} parent=5 // pred_region
      %s916 = ssub.s32 %s8, 2
      // Predicated region
      $region37: #{tpu_custom_call.1} parent=35 // pred_check
        %p917 = pneg %p84
      $region38: #{tpu_custom_call.1} parent=35 // pred_check_branch
        %919 = sbr.rel (%p917) target = $region40
      $region39: #{tpu_custom_call.1} parent=35 // pred_region
        %s920 = smul.u32 4, %s14
        %p921 = scmp.lt.s32.totalorder %s920, 15
        %s922 = scalar_select %p921, %s920, 15
        %s923 = smul.addr %s922, 8
        %s924 = scalar_lea.vmem %s2, %s923
      $region40: #{tpu_custom_call.1} parent=35 // pred_fallthru
        _
    $region36: #{tpu_custom_call.1} parent=5 // pred_fallthru
      _
  $region6: #{tpu_custom_call.1} parent=0 // loop_footer
    %s12 = sadd.s32 1, %s8
  $region7: #{tpu_custom_call.1} parent=0 // loop_footer_branch
    %7 = sbr.rel target = $region3
  $region8: #{tpu_custom_call.1} parent=0 // loop_exit
    _

</llo_original>
